<compile_context>
chip_gen: v7x
topology: tpu7x:2x2x1
jax: 0.10.0
libtpu: 0.0.40
codegen_flags: <defaults>
</compile_context>

<pallas_src>
import functools

import jax
import jax.numpy as jnp
from jax.experimental import pallas as pl
from jax.experimental.pallas import tpu as pltpu


def _round_up(x, m):
    return ((x + m - 1) // m) * m


def _pad_cast_2d(x, rows, cols, dtype):
    """Pad to (rows, cols) and cast, fused into a single XLA op (one HBM pass)."""
    if x.shape == (rows, cols):
        return x if x.dtype == dtype else x.astype(dtype)
    return jnp.zeros((rows, cols), dtype).at[: x.shape[0], : x.shape[1]].set(
        x.astype(dtype))


def _largest_divisor_tile(total, cap, align, min_tiles=1):
    """Largest t <= cap with t % align == 0, total % t == 0, total//t >= min_tiles."""
    best = None
    t = align
    limit = min(cap, total)
    while t <= limit:
        if total % t == 0 and total // t >= min_tiles:
            best = t
        t += align
    return best if best is not None else total


# --------------------------------------------------------------------------
# Pass A: gating + adaptive fusion + support = fusion @ Wg   (row-tiled)
# --------------------------------------------------------------------------
def fusion_support_kernel(x1_ref, x2_ref, wa_ref, wb_ref, bm_ref, wg_ref, sup_ref):
    x1 = x1_ref[...]                                   # [tma, D] f32
    x2 = x2_ref[...]                                   # [tma, D] f32
    wa = wa_ref[...]                                   # [2, D]   (acts on x1)
    wb = wb_ref[...]                                   # [2, D]   (acts on x2)
    bm = bm_ref[...]                                   # [1, 2]

    # Gating logits on VPU (mul/add) + XLU (cross-lane sum): avoids a
    # lane-sparse [tma, D] @ [D, 2] MXU matmul and masked partial stores.
    l1 = jnp.sum(x1 * wa[0:1, :] + x2 * wb[0:1, :], axis=-1, keepdims=True) + bm[:, 0:1]
    l2 = jnp.sum(x1 * wa[1:2, :] + x2 * wb[1:2, :], axis=-1, keepdims=True) + bm[:, 1:2]

    t1 = jnp.tanh(l1)
    t2 = jnp.tanh(l2)

    # softmax (dim=1) followed by L2-normalize: the softmax denominator
    # cancels exactly, so  w_j = e_j * rsqrt(e1^2 + e2^2).  exp/rsqrt -> EUP.
    m = jnp.maximum(t1, t2)
    e1 = jnp.exp(t1 - m)
    e2 = jnp.exp(t2 - m)
    inv = jax.lax.rsqrt(e1 * e1 + e2 * e2)
    w1 = e1 * inv                                      # [tma, 1]
    w2 = e2 * inv                                      # [tma, 1]

    fusion = w1 * x1 + w2 * x2                         # [tma, D]
    # NOTE: no bias / activation here — padded rows must stay exactly zero.
    sup = jnp.dot(fusion, wg_ref[...], preferred_element_type=jnp.float32)
    sup_ref[...] = sup.astype(sup_ref.dtype)           # [tma, Dp] lane-dense


# --------------------------------------------------------------------------
# Pass B: out = adj @ support + bg   (rows "parallel", contraction "arbitrary")
# --------------------------------------------------------------------------
def gcn_agg_kernel(adj_ref, sup_ref, bg_ref, out_ref, acc_ref, *, tk, sup_resident):
    k = pl.program_id(1)

    @pl.when(k == 0)
    def _init():
        acc_ref[...] = jnp.zeros_like(acc_ref)

    if sup_resident:
        # Whole support matrix resident in VMEM (DMA'd once); take the k-slice.
        off = pl.multiple_of(k * tk, 128)
        sup = sup_ref[pl.ds(off, tk), :]
    else:
        sup = sup_ref[...]

    acc_ref[...] += jnp.dot(adj_ref[...], sup, preferred_element_type=jnp.float32)

    @pl.when(k == pl.num_programs(1) - 1)
    def _finalize():
        out_ref[...] = acc_ref[...] + bg_ref[...]      # bias only in epilogue


# --------------------------------------------------------------------------
# Wrapper
# --------------------------------------------------------------------------
def fafgc_forward(x1, x2, adj, params, *, stream_dtype=jnp.bfloat16):
    """FAFGC forward.  `stream_dtype` controls adj/support streaming precision
    (bf16 default: ~2x less HBM traffic on the dominant Pass B stream; MXU
    accumulation stays f32).  Pass jnp.float32 for bit-tight accuracy."""
    N, D = x1.shape
    wm = params["w_mlp"]                               # (2, 2D) torch Linear layout
    wa = wm[:, :D].astype(jnp.float32)                 # (2, D) acts on x1
    wb = wm[:, D:].astype(jnp.float32)                 # (2, D) acts on x2
    bm = params["b_mlp"].reshape(1, 2).astype(jnp.float32)
    wg = params["w_gcn"].astype(jnp.float32)           # (D, D_out)
    bg = params["b_gcn"].astype(jnp.float32)
    d_out = wg.shape[1]
    s_item = jnp.dtype(stream_dtype).itemsize

    # ---- lane-dense output: pad D_out up to a multiple of 128 ------------
    dp = _round_up(d_out, 128)
    wg_p = jnp.zeros((D, dp), jnp.float32).at[:, :d_out].set(wg)
    bg_p = jnp.zeros((1, dp), jnp.float32).at[:, :d_out].set(bg.reshape(1, -1))

    # ---- layout-minimum padding ------------------------------------------
    np_r = _round_up(N, 16)    # output-row axis (sublane-aligned, bf16-safe)
    np_k = _round_up(N, 128)   # contraction / support-row axis (lane-aligned)

    # ---- tile sizes: big tiles, chosen as divisors of the padded sizes ----
    cap_tk = 2048 if s_item <= 2 else 1024
    # keep >= 2 row tiles when possible so v7x's two TensorCores both get work
    tm = _largest_divisor_tile(np_r, 512, 16, min_tiles=2 if np_r >= 256 else 1)
    tk = _largest_divisor_tile(np_k, cap_tk, 128)
    tma = _largest_divisor_tile(np_k, 512, 16)

    # keep the whole support matrix resident in VMEM across Pass B when small
    sup_resident = (2 * np_k * dp * s_item) <= (8 << 20)

    # ---- wrapper-side pad+cast fused into a single op ---------------------
    x1p = _pad_cast_2d(x1, np_k, D, jnp.float32)
    x2p = _pad_cast_2d(x2, np_k, D, jnp.float32)
    adjp = _pad_cast_2d(adj, np_r, np_k, stream_dtype)   # bare cast when aligned

    # ---- VMEM budgets (explicit limit: v5e default scoped VMEM is 16 MiB;
    #      keep the footprint far below v7x's 64 MiB physical) --------------
    vmem_a = (2 * 2 * tma * D * 4            # x1,x2 double-buffered
              + 2 * D * dp * 4               # Wg (constant block)
              + 2 * (2 * D * 4 + 2 * 4)      # wa, wb, bm
              + 2 * tma * dp * s_item)       # support output tiles
    vmem_b = (2 * tm * tk * s_item                                   # adj stream
              + 2 * (np_k if sup_resident else tk) * dp * s_item     # support
              + 2 * dp * 4                                           # bias
              + 2 * tm * dp * 4                                      # out tiles
              + tm * dp * 4)                                         # accumulator

    def _limit(b):
        return int(min(max(b + (4 << 20), 20 << 20), 48 << 20))

    # -------------------- pass A: support = fusion @ Wg --------------------
    support = pl.pallas_call(
        fusion_support_kernel,
        out_shape=jax.ShapeDtypeStruct((np_k, dp), stream_dtype),
        grid_spec=pltpu.PrefetchScalarGridSpec(
            num_scalar_prefetch=0,
            grid=(np_k // tma,),
            in_specs=[
                pl.BlockSpec((tma, D), lambda i: (i, 0)),    # x1
                pl.BlockSpec((tma, D), lambda i: (i, 0)),    # x2
                pl.BlockSpec((2, D), lambda i: (0, 0)),      # wa
                pl.BlockSpec((2, D), lambda i: (0, 0)),      # wb
                pl.BlockSpec((1, 2), lambda i: (0, 0)),      # bm
                pl.BlockSpec((D, dp), lambda i: (0, 0)),     # Wg (padded)
            ],
            out_specs=pl.BlockSpec((tma, dp), lambda i: (i, 0)),
        ),
        compiler_params=pltpu.CompilerParams(
            dimension_semantics=("parallel",),
            vmem_limit_bytes=_limit(vmem_a)),
        cost_estimate=pl.CostEstimate(
            flops=2 * np_k * D * dp + 8 * np_k * D,
            transcendentals=5 * np_k,
            bytes_accessed=2 * np_k * D * 4 + np_k * dp * s_item + D * dp * 4,
        ),
    )(x1p, x2p, wa, wb, bm, wg_p)

    # -------------------- pass B: out = adj @ support + bg -----------------
    if sup_resident:
        sup_spec = pl.BlockSpec((np_k, dp), lambda i, k: (0, 0))   # resident, DMA'd once
        sup_bytes = np_k * dp * s_item
    else:
        sup_spec = pl.BlockSpec((tk, dp), lambda i, k: (k, 0))
        sup_bytes = (np_r // tm) * np_k * dp * s_item

    out_p = pl.pallas_call(
        functools.partial(gcn_agg_kernel, tk=tk, sup_resident=sup_resident),
        out_shape=jax.ShapeDtypeStruct((np_r, dp), jnp.float32),
        grid_spec=pltpu.PrefetchScalarGridSpec(
            num_scalar_prefetch=0,
            grid=(np_r // tm, np_k // tk),
            in_specs=[
                pl.BlockSpec((tm, tk), lambda i, k: (i, k)),   # adj tile stream
                sup_spec,                                      # support
                pl.BlockSpec((1, dp), lambda i, k: (0, 0)),    # bg (padded)
            ],
            out_specs=pl.BlockSpec((tm, dp), lambda i, k: (i, 0)),
            scratch_shapes=[pltpu.VMEM((tm, dp), jnp.float32)],
        ),
        compiler_params=pltpu.CompilerParams(
            dimension_semantics=("parallel", "arbitrary"),
            vmem_limit_bytes=_limit(vmem_b)),
        cost_estimate=pl.CostEstimate(
            flops=2 * np_r * np_k * dp,
            transcendentals=0,
            bytes_accessed=np_r * np_k * s_item + sup_bytes + np_r * dp * 4,
        ),
    )(adjp, support, bg_p)

    return out_p[:N, :d_out]


# --------------------------------------------------------------------------
# Pure-JAX reference mirroring the PyTorch forward exactly
# --------------------------------------------------------------------------
def fafgc_reference(x1, x2, adj, params):
    hi = jax.lax.Precision.HIGHEST
    cat = jnp.concatenate([x1, x2], axis=1)
    mlp = jnp.matmul(cat, params["w_mlp"].T, precision=hi) + params["b_mlp"]
    act = jnp.tanh(mlp)
    sm = jax.nn.softmax(act, axis=1)
    denom = jnp.maximum(jnp.linalg.norm(sm, axis=1, keepdims=True), 1e-12)
    norm = sm / denom
    w1 = norm[:, 0:1]
    w2 = norm[:, 1:2]
    fusion = w1 * x1 + w2 * x2
    support = jnp.matmul(fusion, params["w_gcn"], precision=hi)
    return jnp.matmul(adj, support, precision=hi) + params["b_gcn"]


def _make_inputs(key, n, d_in, d_out):
    k1, k2, k3, k4, k5, k6, k7 = jax.random.split(key, 7)
    x1 = jax.random.normal(k1, (n, d_in), dtype=jnp.float32)
    x2 = jax.random.normal(k2, (n, d_in), dtype=jnp.float32)
    # deterministic symmetric-normalized adjacency (with self loops)
    a = (jax.random.uniform(k3, (n, n)) > 0.5).astype(jnp.float32)
    a = jnp.maximum(a, a.T) + jnp.eye(n, dtype=jnp.float32)
    dinv = 1.0 / jnp.sqrt(jnp.sum(a, axis=1))
    adj = (a * dinv[:, None]) * dinv[None, :]
    params = {
        "w_mlp": 0.1 * jax.random.normal(k4, (2, 2 * d_in), dtype=jnp.float32),
        "b_mlp": 0.1 * jax.random.normal(k5, (2,), dtype=jnp.float32),
        "w_gcn": 0.1 * jax.random.normal(k6, (d_in, d_out), dtype=jnp.float32),
        "b_gcn": 0.1 * jax.random.normal(k7, (d_out,), dtype=jnp.float32),
    }
    return x1, x2, adj, params


if __name__ == "__main__":
    # Small single-tile case — f32 streaming path (bit-tight check)
    x1, x2, adj, params = _make_inputs(jax.random.PRNGKey(0), 8, 32, 16)
    ref = fafgc_reference(x1, x2, adj, params)
    out_f32 = jax.block_until_ready(
        fafgc_forward(x1, x2, adj, params, stream_dtype=jnp.float32))
    assert out_f32.shape == (8, 16)
    assert jnp.allclose(out_f32, ref, atol=1e-4, rtol=1e-4), "mismatch (small, f32)"

    # Multi-tile case with awkward N: exercises minimal row/col padding,
    # multiple row tiles, resident support, and the (parallel, arbitrary) grid.
    x1b, x2b, adjb, pb = _make_inputs(jax.random.PRNGKey(1), 312, 64, 16)
    refb = fafgc_reference(x1b, x2b, adjb, pb)
    outb_f32 = jax.block_until_ready(
        fafgc_forward(x1b, x2b, adjb, pb, stream_dtype=jnp.float32))
    assert outb_f32.shape == (312, 16)
    assert jnp.allclose(outb_f32, refb, atol=1e-4, rtol=1e-4), "mismatch (tiled, f32)"

    # Default bf16-streamed path (adj + support in bf16, f32 MXU accumulation)
    out_bf = jax.block_until_ready(fafgc_forward(x1, x2, adj, params))
    assert jnp.allclose(out_bf, ref, atol=3e-2, rtol=3e-2), "mismatch (small, bf16)"
    outb_bf = jax.block_until_ready(fafgc_forward(x1b, x2b, adjb, pb))
    assert jnp.allclose(outb_bf, refb, atol=3e-2, rtol=3e-2), "mismatch (tiled, bf16)"

    print("KERNEL_OK")
</pallas_src>

<mosaic_0001>
module attributes {stable_mosaic.version = 11 : i64} {
  func.func @fusion_support_kernel(%arg0: i32, %arg1: memref<128x32xf32, #tpu.memory_space<vmem>>, %arg2: memref<128x32xf32, #tpu.memory_space<vmem>>, %arg3: memref<2x32xf32, #tpu.memory_space<vmem>>, %arg4: memref<2x32xf32, #tpu.memory_space<vmem>>, %arg5: memref<1x2xf32, #tpu.memory_space<vmem>>, %arg6: memref<32x128xf32, #tpu.memory_space<vmem>>, %arg7: memref<128x128xf32, #tpu.memory_space<vmem>>) attributes {dimension_semantics = [#tpu.dimension_semantics<parallel>], iteration_bounds = array<i64: 1>, scalar_prefetch = 0 : i64, scratch_operands = 0 : i64, tpu.core_type = #tpu.core_type<tc>, window_params = [{transform_indices = @transform_0, window_bounds = array<i64: 128, 32>}, {transform_indices = @transform_1, window_bounds = array<i64: 128, 32>}, {pipeline_mode = #tpu.pipeline_mode<synchronous>, transform_indices = @transform_2, window_bounds = array<i64: 2, 32>}, {pipeline_mode = #tpu.pipeline_mode<synchronous>, transform_indices = @transform_3, window_bounds = array<i64: 2, 32>}, {pipeline_mode = #tpu.pipeline_mode<synchronous>, transform_indices = @transform_4, window_bounds = array<i64: 1, 2>}, {pipeline_mode = #tpu.pipeline_mode<synchronous>, transform_indices = @transform_5, window_bounds = array<i64: 32, 128>}, {transform_indices = @transform_6, window_bounds = array<i64: 128, 128>}]} {
    %c0 = arith.constant 0 : index
    %c0_0 = arith.constant 0 : index
    %0 = vector.load %arg1[%c0, %c0_0] : memref<128x32xf32, #tpu.memory_space<vmem>>, vector<128x32xf32>
    %c0_1 = arith.constant 0 : index
    %c0_2 = arith.constant 0 : index
    %1 = vector.load %arg2[%c0_1, %c0_2] : memref<128x32xf32, #tpu.memory_space<vmem>>, vector<128x32xf32>
    %c0_3 = arith.constant 0 : index
    %c0_4 = arith.constant 0 : index
    %2 = vector.load %arg3[%c0_3, %c0_4] : memref<2x32xf32, #tpu.memory_space<vmem>>, vector<2x32xf32>
    %c0_5 = arith.constant 0 : index
    %c0_6 = arith.constant 0 : index
    %3 = vector.load %arg4[%c0_5, %c0_6] : memref<2x32xf32, #tpu.memory_space<vmem>>, vector<2x32xf32>
    %c0_7 = arith.constant 0 : index
    %c0_8 = arith.constant 0 : index
    %4 = vector.load %arg5[%c0_7, %c0_8] : memref<1x2xf32, #tpu.memory_space<vmem>>, vector<1x2xf32>
    %5 = vector.extract_strided_slice %2 {offsets = [0, 0], sizes = [1, 32], strides = [1, 1]} : vector<2x32xf32> to vector<1x32xf32>
    %6 = vector.broadcast %5 : vector<1x32xf32> to vector<128x32xf32>
    %7 = arith.mulf %0, %6 : vector<128x32xf32>
    %8 = vector.extract_strided_slice %3 {offsets = [0, 0], sizes = [1, 32], strides = [1, 1]} : vector<2x32xf32> to vector<1x32xf32>
    %9 = vector.broadcast %8 : vector<1x32xf32> to vector<128x32xf32>
    %10 = arith.mulf %1, %9 : vector<128x32xf32>
    %11 = arith.addf %7, %10 : vector<128x32xf32>
    %cst = arith.constant dense<0.000000e+00> : vector<128xf32>
    %12 = vector.multi_reduction <add>, %11, %cst [1] : vector<128x32xf32> to vector<128xf32>
    %13 = vector.shape_cast %12 : vector<128xf32> to vector<128x1xf32>
    %14 = vector.extract_strided_slice %4 {offsets = [0, 0], sizes = [1, 1], strides = [1, 1]} : vector<1x2xf32> to vector<1x1xf32>
    %15 = vector.broadcast %14 : vector<1x1xf32> to vector<128x1xf32>
    %16 = arith.addf %13, %15 : vector<128x1xf32>
    %17 = vector.extract_strided_slice %2 {offsets = [1, 0], sizes = [1, 32], strides = [1, 1]} : vector<2x32xf32> to vector<1x32xf32>
    %18 = vector.broadcast %17 : vector<1x32xf32> to vector<128x32xf32>
    %19 = arith.mulf %0, %18 : vector<128x32xf32>
    %20 = vector.extract_strided_slice %3 {offsets = [1, 0], sizes = [1, 32], strides = [1, 1]} : vector<2x32xf32> to vector<1x32xf32>
    %21 = vector.broadcast %20 : vector<1x32xf32> to vector<128x32xf32>
    %22 = arith.mulf %1, %21 : vector<128x32xf32>
    %23 = arith.addf %19, %22 : vector<128x32xf32>
    %cst_9 = arith.constant dense<0.000000e+00> : vector<128xf32>
    %24 = vector.multi_reduction <add>, %23, %cst_9 [1] : vector<128x32xf32> to vector<128xf32>
    %25 = vector.shape_cast %24 : vector<128xf32> to vector<128x1xf32>
    %26 = vector.extract_strided_slice %4 {offsets = [0, 1], sizes = [1, 1], strides = [1, 1]} : vector<1x2xf32> to vector<1x1xf32>
    %27 = vector.broadcast %26 : vector<1x1xf32> to vector<128x1xf32>
    %28 = arith.addf %25, %27 : vector<128x1xf32>
    %29 = math.tanh %16 : vector<128x1xf32>
    %30 = math.tanh %28 : vector<128x1xf32>
    %31 = arith.maximumf %29, %30 : vector<128x1xf32>
    %32 = arith.subf %29, %31 : vector<128x1xf32>
    %33 = math.exp %32 : vector<128x1xf32>
    %34 = arith.subf %30, %31 : vector<128x1xf32>
    %35 = math.exp %34 : vector<128x1xf32>
    %36 = arith.mulf %33, %33 : vector<128x1xf32>
    %37 = arith.mulf %35, %35 : vector<128x1xf32>
    %38 = arith.addf %36, %37 : vector<128x1xf32>
    %39 = math.rsqrt %38 : vector<128x1xf32>
    %40 = arith.mulf %33, %39 : vector<128x1xf32>
    %41 = arith.mulf %35, %39 : vector<128x1xf32>
    %42 = vector.broadcast %40 : vector<128x1xf32> to vector<128x32xf32>
    %43 = arith.mulf %42, %0 : vector<128x32xf32>
    %44 = vector.broadcast %41 : vector<128x1xf32> to vector<128x32xf32>
    %45 = arith.mulf %44, %1 : vector<128x32xf32>
    %46 = arith.addf %43, %45 : vector<128x32xf32>
    %c0_10 = arith.constant 0 : index
    %c0_11 = arith.constant 0 : index
    %47 = vector.load %arg6[%c0_10, %c0_11] : memref<32x128xf32, #tpu.memory_space<vmem>>, vector<32x128xf32>
    %cst_12 = arith.constant dense<0.000000e+00> : vector<128x128xf32>
    %48 = tpu.matmul %46, %47, %cst_12 {dimension_numbers = #tpu.dot_dimension_numbers<[1], [0], [0], [1], [0, 0, 1, 1], [], []>} : vector<128x32xf32>, vector<32x128xf32>, vector<128x128xf32> -> vector<128x128xf32>
    %c0_13 = arith.constant 0 : index
    %c0_14 = arith.constant 0 : index
    %49 = vector.load %arg7[%c0_13, %c0_14] : memref<128x128xf32, #tpu.memory_space<vmem>>, vector<128x128xf32>
    tpu.vector_store %arg7[%c0_13, %c0_14], %48 {strides = array<i32>} : memref<128x128xf32, #tpu.memory_space<vmem>>, vector<128x128xf32>,
    return
  }
  func.func @transform_0(%arg0: i32) -> (i32, i32) {
    %c0_i32 = arith.constant 0 : i32
    %c0_i32_0 = arith.constant 0 : i32
    return %arg0, %c0_i32 : i32, i32
  }
  func.func @transform_1(%arg0: i32) -> (i32, i32) {
    %c0_i32 = arith.constant 0 : i32
    %c0_i32_0 = arith.constant 0 : i32
    return %arg0, %c0_i32 : i32, i32
  }
  func.func @transform_2(%arg0: i32) -> (i32, i32) {
    %c0_i32 = arith.constant 0 : i32
    %c0_i32_0 = arith.constant 0 : i32
    %c0_i32_1 = arith.constant 0 : i32
    return %c0_i32, %c0_i32_0 : i32, i32
  }
  func.func @transform_3(%arg0: i32) -> (i32, i32) {
    %c0_i32 = arith.constant 0 : i32
    %c0_i32_0 = arith.constant 0 : i32
    %c0_i32_1 = arith.constant 0 : i32
    return %c0_i32, %c0_i32_0 : i32, i32
  }
  func.func @transform_4(%arg0: i32) -> (i32, i32) {
    %c0_i32 = arith.constant 0 : i32
    %c0_i32_0 = arith.constant 0 : i32
    %c0_i32_1 = arith.constant 0 : i32
    return %c0_i32, %c0_i32_0 : i32, i32
  }
  func.func @transform_5(%arg0: i32) -> (i32, i32) {
    %c0_i32 = arith.constant 0 : i32
    %c0_i32_0 = arith.constant 0 : i32
    %c0_i32_1 = arith.constant 0 : i32
    return %c0_i32, %c0_i32_0 : i32, i32
  }
  func.func @transform_6(%arg0: i32) -> (i32, i32) {
    %c0_i32 = arith.constant 0 : i32
    %c0_i32_0 = arith.constant 0 : i32
    return %arg0, %c0_i32 : i32, i32
  }
}

</mosaic_0001>

<llo_original>
// kernel: tpu_custom_call.1
$region0: #{tpu_custom_call.1}
  #allocation0 [shape = 'u32[]', space=smem, size = 0x4, offset = 0x4, fixed_abs, tag = 'smem constant byte address 0x4 - core index']
  #allocation1 [shape = 'u32[144,128]{1,0:T(1,128)}', space=vmem, size = 0x12000, scoped, tag = 'internal scratch']
  %s0 = inlined_call_operand.vmem [shape: f32[128,32], index: 0, kind: input, shape index: {}]
  %s1 = inlined_call_operand.vmem [shape: f32[128,32], index: 1, kind: input, shape index: {}]
  %s2 = inlined_call_operand.vmem [shape: f32[2,32], index: 2, kind: input, shape index: {}]
  %s3 = inlined_call_operand.vmem [shape: f32[2,32], index: 3, kind: input, shape index: {}]
  %s4 = inlined_call_operand.vmem [shape: f32[1,2], index: 4, kind: input, shape index: {}]
  %s5 = inlined_call_operand.vmem [shape: f32[32,128], index: 5, kind: input, shape index: {}]
  %s6 = inlined_call_operand.hbm [shape: f32[128,128], index: 6, kind: output, shape index: {}]
  %s7 = sld [smem:[#allocation0]]
  $region34: #{tpu_custom_call.1} parent=0
    _
  %s9 = ssub.s32 1, %s7
  %s10 = scalar_select 0, %s9, %s7
  $region1: #{tpu_custom_call.1} parent=0
    #allocation2 [shape = 'u8[65536]{0}', space=vmem, size = 0x10000, scoped, tag = 'output window, operand 0, single buffered']
    #allocation3 [shape = 's32[1]{0}', space=sflag, size = 0x4, scoped, tag = 'scoped memory for tpu_custom_call.1']
    %11 = vsyncpa [#allocation3], 0
    // Predicated region
    $region2: #{tpu_custom_call.1} parent=1 // pred_check
      _
    $region3: #{tpu_custom_call.1} parent=1 // pred_check_branch
      %13 = sbr.rel (0) target = $region5
    $region4: #{tpu_custom_call.1} parent=1 // pred_region
      _
    $region5: #{tpu_custom_call.1} parent=1 // pred_fallthru
      _
    // Predicated region
    $region6: #{tpu_custom_call.1} parent=1 // pred_check
      _
    $region7: #{tpu_custom_call.1} parent=1 // pred_check_branch
      %15 = sbr.rel (0) target = $region9
    $region8: #{tpu_custom_call.1} parent=1 // pred_region
      _
    $region9: #{tpu_custom_call.1} parent=1 // pred_fallthru
      _
    // Predicated region
    $region10: #{tpu_custom_call.1} parent=1 // pred_check
      _
    $region11: #{tpu_custom_call.1} parent=1 // pred_check_branch
      %17 = sbr.rel (0) target = $region13
    $region12: #{tpu_custom_call.1} parent=1 // pred_region
      _
    $region13: #{tpu_custom_call.1} parent=1 // pred_fallthru
      _
    // Predicated region
    $region14: #{tpu_custom_call.1} parent=1 // pred_check
      _
    $region15: #{tpu_custom_call.1} parent=1 // pred_check_branch
      %19 = sbr.rel (0) target = $region17
    $region16: #{tpu_custom_call.1} parent=1 // pred_region
      _
    $region17: #{tpu_custom_call.1} parent=1 // pred_fallthru
      _
    // Predicated region
    $region18: #{tpu_custom_call.1} parent=1 // pred_check
      _
    $region19: #{tpu_custom_call.1} parent=1 // pred_check_branch
      %21 = sbr.rel (0) target = $region21
    $region20: #{tpu_custom_call.1} parent=1 // pred_region
      _
    $region21: #{tpu_custom_call.1} parent=1 // pred_fallthru
      _
    // Predicated region
    $region22: #{tpu_custom_call.1} parent=1 // pred_check
      _
    $region23: #{tpu_custom_call.1} parent=1 // pred_check_branch
      %23 = sbr.rel (0) target = $region25
    $region24: #{tpu_custom_call.1} parent=1 // pred_region
      _
    $region25: #{tpu_custom_call.1} parent=1 // pred_fallthru
      _
    %v24 = vld [vmem:[%s0] sm:$0xff]
    %v25 = vld [vmem:[%s0 + $0x8] sm:$0xff]
    %v26 = vld [vmem:[%s0 + $0x10] sm:$0xff]
    %v27 = vld [vmem:[%s0 + $0x18] sm:$0xff]
    %v28 = vld [vmem:[%s0 + $0x20] sm:$0xff]
    %v29 = vld [vmem:[%s0 + $0x28] sm:$0xff]
    %v30 = vld [vmem:[%s0 + $0x30] sm:$0xff]
    %v31 = vld [vmem:[%s0 + $0x38] sm:$0xff]
    %v32 = vld [vmem:[%s0 + $0x40] sm:$0xff]
    %v33 = vld [vmem:[%s0 + $0x48] sm:$0xff]
    %v34 = vld [vmem:[%s0 + $0x50] sm:$0xff]
    %v35 = vld [vmem:[%s0 + $0x58] sm:$0xff]
    %v36 = vld [vmem:[%s0 + $0x60] sm:$0xff]
    %v37 = vld [vmem:[%s0 + $0x68] sm:$0xff]
    %v38 = vld [vmem:[%s0 + $0x70] sm:$0xff]
    %v39 = vld [vmem:[%s0 + $0x78] sm:$0xff]
    %v40 = vld [vmem:[%s1] sm:$0xff]
    %v41 = vld [vmem:[%s1 + $0x8] sm:$0xff]
    %v42 = vld [vmem:[%s1 + $0x10] sm:$0xff]
    %v43 = vld [vmem:[%s1 + $0x18] sm:$0xff]
    %v44 = vld [vmem:[%s1 + $0x20] sm:$0xff]
    %v45 = vld [vmem:[%s1 + $0x28] sm:$0xff]
    %v46 = vld [vmem:[%s1 + $0x30] sm:$0xff]
    %v47 = vld [vmem:[%s1 + $0x38] sm:$0xff]
    %v48 = vld [vmem:[%s1 + $0x40] sm:$0xff]
    %v49 = vld [vmem:[%s1 + $0x48] sm:$0xff]
    %v50 = vld [vmem:[%s1 + $0x50] sm:$0xff]
    %v51 = vld [vmem:[%s1 + $0x58] sm:$0xff]
    %v52 = vld [vmem:[%s1 + $0x60] sm:$0xff]
    %v53 = vld [vmem:[%s1 + $0x68] sm:$0xff]
    %v54 = vld [vmem:[%s1 + $0x70] sm:$0xff]
    %v55 = vld [vmem:[%s1 + $0x78] sm:$0xff]
    %v56 = vld [vmem:[%s2] sm:$0x3]
    %v57 = vld [vmem:[%s3] sm:$0x3]
    %v58 = vld [vmem:[%s4] sm:$0x1]
    %v59 = vlaneseq
    %v60 = vshrl.u32 %v59, 7
    %v61 = vsub.s32 0, %v60
    %v62 = vrot.slane %v56, %v61
    %v63 = vmul.f32 %v24, %v62
    %v64 = vmul.f32 %v25, %v62
    %v65 = vmul.f32 %v26, %v62
    %v66 = vmul.f32 %v27, %v62
    %v67 = vmul.f32 %v28, %v62
    %v68 = vmul.f32 %v29, %v62
    %v69 = vmul.f32 %v30, %v62
    %v70 = vmul.f32 %v31, %v62
    %v71 = vmul.f32 %v32, %v62
    %v72 = vmul.f32 %v33, %v62
    %v73 = vmul.f32 %v34, %v62
    %v74 = vmul.f32 %v35, %v62
    %v75 = vmul.f32 %v36, %v62
    %v76 = vmul.f32 %v37, %v62
    %v77 = vmul.f32 %v38, %v62
    %v78 = vmul.f32 %v39, %v62
    %v79 = vlaneseq
    %v80 = vshrl.u32 %v79, 7
    %v81 = vsub.s32 0, %v80
    %v82 = vrot.slane %v57, %v81
    %v83 = vmul.f32 %v40, %v82
    %v84 = vmul.f32 %v41, %v82
    %v85 = vmul.f32 %v42, %v82
    %v86 = vmul.f32 %v43, %v82
    %v87 = vmul.f32 %v44, %v82
    %v88 = vmul.f32 %v45, %v82
    %v89 = vmul.f32 %v46, %v82
    %v90 = vmul.f32 %v47, %v82
    %v91 = vmul.f32 %v48, %v82
    %v92 = vmul.f32 %v49, %v82
    %v93 = vmul.f32 %v50, %v82
    %v94 = vmul.f32 %v51, %v82
    %v95 = vmul.f32 %v52, %v82
    %v96 = vmul.f32 %v53, %v82
    %v97 = vmul.f32 %v54, %v82
    %v98 = vmul.f32 %v55, %v82
    %v99 = vadd.f32 %v63, %v83
    %v100 = vadd.f32 %v64, %v84
    %v101 = vadd.f32 %v65, %v85
    %v102 = vadd.f32 %v66, %v86
    %v103 = vadd.f32 %v67, %v87
    %v104 = vadd.f32 %v68, %v88
    %v105 = vadd.f32 %v69, %v89
    %v106 = vadd.f32 %v70, %v90
    %v107 = vadd.f32 %v71, %v91
    %v108 = vadd.f32 %v72, %v92
    %v109 = vadd.f32 %v73, %v93
    %v110 = vadd.f32 %v74, %v94
    %v111 = vadd.f32 %v75, %v95
    %v112 = vadd.f32 %v76, %v96
    %v113 = vadd.f32 %v77, %v97
    %v114 = vadd.f32 %v78, %v98
    %vm115 = vcmask 261120
    %v116 = vsel %vm115, %v99, 0.0
    %117 = vadd.xlane.f32.xlu0 %v116
    %v118 = vpop.xlane.xlu0 %117
    %v119 = vsel %vm115, %v100, 0.0
    %120 = vadd.xlane.f32.xlu0 %v119
    %v121 = vpop.xlane.xlu0 %120
    %v122 = vsel %vm115, %v101, 0.0
    %123 = vadd.xlane.f32.xlu0 %v122
    %v124 = vpop.xlane.xlu0 %123
    %v125 = vsel %vm115, %v102, 0.0
    %126 = vadd.xlane.f32.xlu0 %v125
    %v127 = vpop.xlane.xlu0 %126
    %v128 = vsel %vm115, %v103, 0.0
    %129 = vadd.xlane.f32.xlu0 %v128
    %v130 = vpop.xlane.xlu0 %129
    %v131 = vsel %vm115, %v104, 0.0
    %132 = vadd.xlane.f32.xlu0 %v131
    %v133 = vpop.xlane.xlu0 %132
    %v134 = vsel %vm115, %v105, 0.0
    %135 = vadd.xlane.f32.xlu0 %v134
    %v136 = vpop.xlane.xlu0 %135
    %v137 = vsel %vm115, %v106, 0.0
    %138 = vadd.xlane.f32.xlu0 %v137
    %v139 = vpop.xlane.xlu0 %138
    %v140 = vsel %vm115, %v107, 0.0
    %141 = vadd.xlane.f32.xlu0 %v140
    %v142 = vpop.xlane.xlu0 %141
    %v143 = vsel %vm115, %v108, 0.0
    %144 = vadd.xlane.f32.xlu0 %v143
    %v145 = vpop.xlane.xlu0 %144
    %v146 = vsel %vm115, %v109, 0.0
    %147 = vadd.xlane.f32.xlu0 %v146
    %v148 = vpop.xlane.xlu0 %147
    %v149 = vsel %vm115, %v110, 0.0
    %150 = vadd.xlane.f32.xlu0 %v149
    %v151 = vpop.xlane.xlu0 %150
    %v152 = vsel %vm115, %v111, 0.0
    %153 = vadd.xlane.f32.xlu0 %v152
    %v154 = vpop.xlane.xlu0 %153
    %v155 = vsel %vm115, %v112, 0.0
    %156 = vadd.xlane.f32.xlu0 %v155
    %v157 = vpop.xlane.xlu0 %156
    %v158 = vsel %vm115, %v113, 0.0
    %159 = vadd.xlane.f32.xlu0 %v158
    %v160 = vpop.xlane.xlu0 %159
    %v161 = vsel %vm115, %v114, 0.0
    %162 = vadd.xlane.f32.xlu0 %v161
    %v163 = vpop.xlane.xlu0 %162
    %v165 = vlaneseq
    %v166 = vshrl.u32 %v165, 7
    %v167 = vsub.s32 0, %v166
    %v168 = vrot.slane %v58, %v167
    %v170 = vadd.f32 %v118, %v168
    %v171 = vadd.f32 %v121, %v168
    %v172 = vadd.f32 %v124, %v168
    %v173 = vadd.f32 %v127, %v168
    %v174 = vadd.f32 %v130, %v168
    %v175 = vadd.f32 %v133, %v168
    %v176 = vadd.f32 %v136, %v168
    %v177 = vadd.f32 %v139, %v168
    %v178 = vadd.f32 %v142, %v168
    %v179 = vadd.f32 %v145, %v168
    %v180 = vadd.f32 %v148, %v168
    %v181 = vadd.f32 %v151, %v168
    %v182 = vadd.f32 %v154, %v168
    %v183 = vadd.f32 %v157, %v168
    %v184 = vadd.f32 %v160, %v168
    %v185 = vadd.f32 %v163, %v168
    %v186 = vlaneseq
    %v187 = vshrl.u32 %v186, 7
    %v188 = vsub.s32 1, %v187
    %v189 = vrot.slane %v56, %v188
    %v190 = vmul.f32 %v24, %v189
    %v191 = vmul.f32 %v25, %v189
    %v192 = vmul.f32 %v26, %v189
    %v193 = vmul.f32 %v27, %v189
    %v194 = vmul.f32 %v28, %v189
    %v195 = vmul.f32 %v29, %v189
    %v196 = vmul.f32 %v30, %v189
    %v197 = vmul.f32 %v31, %v189
    %v198 = vmul.f32 %v32, %v189
    %v199 = vmul.f32 %v33, %v189
    %v200 = vmul.f32 %v34, %v189
    %v201 = vmul.f32 %v35, %v189
    %v202 = vmul.f32 %v36, %v189
    %v203 = vmul.f32 %v37, %v189
    %v204 = vmul.f32 %v38, %v189
    %v205 = vmul.f32 %v39, %v189
    %v206 = vlaneseq
    %v207 = vshrl.u32 %v206, 7
    %v208 = vsub.s32 1, %v207
    %v209 = vrot.slane %v57, %v208
    %v210 = vmul.f32 %v40, %v209
    %v211 = vmul.f32 %v41, %v209
    %v212 = vmul.f32 %v42, %v209
    %v213 = vmul.f32 %v43, %v209
    %v214 = vmul.f32 %v44, %v209
    %v215 = vmul.f32 %v45, %v209
    %v216 = vmul.f32 %v46, %v209
    %v217 = vmul.f32 %v47, %v209
    %v218 = vmul.f32 %v48, %v209
    %v219 = vmul.f32 %v49, %v209
    %v220 = vmul.f32 %v50, %v209
    %v221 = vmul.f32 %v51, %v209
    %v222 = vmul.f32 %v52, %v209
    %v223 = vmul.f32 %v53, %v209
    %v224 = vmul.f32 %v54, %v209
    %v225 = vmul.f32 %v55, %v209
    %v226 = vadd.f32 %v190, %v210
    %v227 = vadd.f32 %v191, %v211
    %v228 = vadd.f32 %v192, %v212
    %v229 = vadd.f32 %v193, %v213
    %v230 = vadd.f32 %v194, %v214
    %v231 = vadd.f32 %v195, %v215
    %v232 = vadd.f32 %v196, %v216
    %v233 = vadd.f32 %v197, %v217
    %v234 = vadd.f32 %v198, %v218
    %v235 = vadd.f32 %v199, %v219
    %v236 = vadd.f32 %v200, %v220
    %v237 = vadd.f32 %v201, %v221
    %v238 = vadd.f32 %v202, %v222
    %v239 = vadd.f32 %v203, %v223
    %v240 = vadd.f32 %v204, %v224
    %v241 = vadd.f32 %v205, %v225
    %v242 = vsel %vm115, %v226, 0.0
    %243 = vadd.xlane.f32.xlu0 %v242
    %v244 = vpop.xlane.xlu0 %243
    %v245 = vsel %vm115, %v227, 0.0
    %246 = vadd.xlane.f32.xlu0 %v245
    %v247 = vpop.xlane.xlu0 %246
    %v248 = vsel %vm115, %v228, 0.0
    %249 = vadd.xlane.f32.xlu0 %v248
    %v250 = vpop.xlane.xlu0 %249
    %v251 = vsel %vm115, %v229, 0.0
    %252 = vadd.xlane.f32.xlu0 %v251
    %v253 = vpop.xlane.xlu0 %252
    %v254 = vsel %vm115, %v230, 0.0
    %255 = vadd.xlane.f32.xlu0 %v254
    %v256 = vpop.xlane.xlu0 %255
    %v257 = vsel %vm115, %v231, 0.0
    %258 = vadd.xlane.f32.xlu0 %v257
    %v259 = vpop.xlane.xlu0 %258
    %v260 = vsel %vm115, %v232, 0.0
    %261 = vadd.xlane.f32.xlu0 %v260
    %v262 = vpop.xlane.xlu0 %261
    %v263 = vsel %vm115, %v233, 0.0
    %264 = vadd.xlane.f32.xlu0 %v263
    %v265 = vpop.xlane.xlu0 %264
    %v266 = vsel %vm115, %v234, 0.0
    %267 = vadd.xlane.f32.xlu0 %v266
    %v268 = vpop.xlane.xlu0 %267
    %v269 = vsel %vm115, %v235, 0.0
    %270 = vadd.xlane.f32.xlu0 %v269
    %v271 = vpop.xlane.xlu0 %270
    %v272 = vsel %vm115, %v236, 0.0
    %273 = vadd.xlane.f32.xlu0 %v272
    %v274 = vpop.xlane.xlu0 %273
    %v275 = vsel %vm115, %v237, 0.0
    %276 = vadd.xlane.f32.xlu0 %v275
    %v277 = vpop.xlane.xlu0 %276
    %v278 = vsel %vm115, %v238, 0.0
    %279 = vadd.xlane.f32.xlu0 %v278
    %v280 = vpop.xlane.xlu0 %279
    %v281 = vsel %vm115, %v239, 0.0
    %282 = vadd.xlane.f32.xlu0 %v281
    %v283 = vpop.xlane.xlu0 %282
    %v284 = vsel %vm115, %v240, 0.0
    %285 = vadd.xlane.f32.xlu0 %v284
    %v286 = vpop.xlane.xlu0 %285
    %v287 = vsel %vm115, %v241, 0.0
    %288 = vadd.xlane.f32.xlu0 %v287
    %v289 = vpop.xlane.xlu0 %288
    %v290 = vadd.f32 %v244, %v168
    %v291 = vadd.f32 %v247, %v168
    %v292 = vadd.f32 %v250, %v168
    %v293 = vadd.f32 %v253, %v168
    %v294 = vadd.f32 %v256, %v168
    %v295 = vadd.f32 %v259, %v168
    %v296 = vadd.f32 %v262, %v168
    %v297 = vadd.f32 %v265, %v168
    %v298 = vadd.f32 %v268, %v168
    %v299 = vadd.f32 %v271, %v168
    %v300 = vadd.f32 %v274, %v168
    %v301 = vadd.f32 %v277, %v168
    %v302 = vadd.f32 %v280, %v168
    %v303 = vadd.f32 %v283, %v168
    %v304 = vadd.f32 %v286, %v168
    %v305 = vadd.f32 %v289, %v168
    %v306 = vtanh.pop %v170
    %v307 = vtanh.pop %v171
    %v308 = vtanh.pop %v172
    %v309 = vtanh.pop %v173
    %v310 = vtanh.pop %v174
    %v311 = vtanh.pop %v175
    %v312 = vtanh.pop %v176
    %v313 = vtanh.pop %v177
    %v314 = vtanh.pop %v178
    %v315 = vtanh.pop %v179
    %v316 = vtanh.pop %v180
    %v317 = vtanh.pop %v181
    %v318 = vtanh.pop %v182
    %v319 = vtanh.pop %v183
    %v320 = vtanh.pop %v184
    %v321 = vtanh.pop %v185
    %v322 = vtanh.pop %v290
    %v323 = vtanh.pop %v291
    %v324 = vtanh.pop %v292
    %v325 = vtanh.pop %v293
    %v326 = vtanh.pop %v294
    %v327 = vtanh.pop %v295
    %v328 = vtanh.pop %v296
    %v329 = vtanh.pop %v297
    %v330 = vtanh.pop %v298
    %v331 = vtanh.pop %v299
    %v332 = vtanh.pop %v300
    %v333 = vtanh.pop %v301
    %v334 = vtanh.pop %v302
    %v335 = vtanh.pop %v303
    %v336 = vtanh.pop %v304
    %v337 = vtanh.pop %v305
    %354 = vrot.lane.b32.xlu0 %v322, 127
    %v355 = vpop.permute.xlu0 %354
    %356 = vrot.lane.b32.xlu0 %v323, 127
    %v357 = vpop.permute.xlu0 %356
    %358 = vrot.lane.b32.xlu0 %v324, 127
    %v359 = vpop.permute.xlu0 %358
    %360 = vrot.lane.b32.xlu0 %v325, 127
    %v361 = vpop.permute.xlu0 %360
    %362 = vrot.lane.b32.xlu0 %v326, 127
    %v363 = vpop.permute.xlu0 %362
    %364 = vrot.lane.b32.xlu0 %v327, 127
    %v365 = vpop.permute.xlu0 %364
    %366 = vrot.lane.b32.xlu0 %v328, 127
    %v367 = vpop.permute.xlu0 %366
    %368 = vrot.lane.b32.xlu0 %v329, 127
    %v369 = vpop.permute.xlu0 %368
    %370 = vrot.lane.b32.xlu0 %v330, 127
    %v371 = vpop.permute.xlu0 %370
    %372 = vrot.lane.b32.xlu0 %v331, 127
    %v373 = vpop.permute.xlu0 %372
    %374 = vrot.lane.b32.xlu0 %v332, 127
    %v375 = vpop.permute.xlu0 %374
    %376 = vrot.lane.b32.xlu0 %v333, 127
    %v377 = vpop.permute.xlu0 %376
    %378 = vrot.lane.b32.xlu0 %v334, 127
    %v379 = vpop.permute.xlu0 %378
    %380 = vrot.lane.b32.xlu0 %v335, 127
    %v381 = vpop.permute.xlu0 %380
    %382 = vrot.lane.b32.xlu0 %v336, 127
    %v383 = vpop.permute.xlu0 %382
    %384 = vrot.lane.b32.xlu0 %v337, 127
    %v385 = vpop.permute.xlu0 %384
    %v402 = vmax.f32 %v306, %v355
    %v403 = vmax.f32 %v307, %v357
    %v404 = vmax.f32 %v308, %v359
    %v405 = vmax.f32 %v309, %v361
    %v406 = vmax.f32 %v310, %v363
    %v407 = vmax.f32 %v311, %v365
    %v408 = vmax.f32 %v312, %v367
    %v409 = vmax.f32 %v313, %v369
    %v410 = vmax.f32 %v314, %v371
    %v411 = vmax.f32 %v315, %v373
    %v412 = vmax.f32 %v316, %v375
    %v413 = vmax.f32 %v317, %v377
    %v414 = vmax.f32 %v318, %v379
    %v415 = vmax.f32 %v319, %v381
    %v416 = vmax.f32 %v320, %v383
    %v417 = vmax.f32 %v321, %v385
    %v418 = vsub.f32 %v306, %v402
    %v419 = vsub.f32 %v307, %v403
    %v420 = vsub.f32 %v308, %v404
    %v421 = vsub.f32 %v309, %v405
    %v422 = vsub.f32 %v310, %v406
    %v423 = vsub.f32 %v311, %v407
    %v424 = vsub.f32 %v312, %v408
    %v425 = vsub.f32 %v313, %v409
    %v426 = vsub.f32 %v314, %v410
    %v427 = vsub.f32 %v315, %v411
    %v428 = vsub.f32 %v316, %v412
    %v429 = vsub.f32 %v317, %v413
    %v430 = vsub.f32 %v318, %v414
    %v431 = vsub.f32 %v319, %v415
    %v432 = vsub.f32 %v320, %v416
    %v433 = vsub.f32 %v321, %v417
    %v434 = vmul.f32 %v418, 1.442695
    %v435 = vpow.pop %v434
    %v436 = vmul.f32 %v419, 1.442695
    %v437 = vpow.pop %v436
    %v438 = vmul.f32 %v420, 1.442695
    %v439 = vpow.pop %v438
    %v440 = vmul.f32 %v421, 1.442695
    %v441 = vpow.pop %v440
    %v442 = vmul.f32 %v422, 1.442695
    %v443 = vpow.pop %v442
    %v444 = vmul.f32 %v423, 1.442695
    %v445 = vpow.pop %v444
    %v446 = vmul.f32 %v424, 1.442695
    %v447 = vpow.pop %v446
    %v448 = vmul.f32 %v425, 1.442695
    %v449 = vpow.pop %v448
    %v450 = vmul.f32 %v426, 1.442695
    %v451 = vpow.pop %v450
    %v452 = vmul.f32 %v427, 1.442695
    %v453 = vpow.pop %v452
    %v454 = vmul.f32 %v428, 1.442695
    %v455 = vpow.pop %v454
    %v456 = vmul.f32 %v429, 1.442695
    %v457 = vpow.pop %v456
    %v458 = vmul.f32 %v430, 1.442695
    %v459 = vpow.pop %v458
    %v460 = vmul.f32 %v431, 1.442695
    %v461 = vpow.pop %v460
    %v462 = vmul.f32 %v432, 1.442695
    %v463 = vpow.pop %v462
    %v464 = vmul.f32 %v433, 1.442695
    %v465 = vpow.pop %v464
    %482 = vrot.lane.b32.xlu0 %v402, 1
    %v483 = vpop.permute.xlu0 %482
    %484 = vrot.lane.b32.xlu0 %v403, 1
    %v485 = vpop.permute.xlu0 %484
    %486 = vrot.lane.b32.xlu0 %v404, 1
    %v487 = vpop.permute.xlu0 %486
    %488 = vrot.lane.b32.xlu0 %v405, 1
    %v489 = vpop.permute.xlu0 %488
    %490 = vrot.lane.b32.xlu0 %v406, 1
    %v491 = vpop.permute.xlu0 %490
    %492 = vrot.lane.b32.xlu0 %v407, 1
    %v493 = vpop.permute.xlu0 %492
    %494 = vrot.lane.b32.xlu0 %v408, 1
    %v495 = vpop.permute.xlu0 %494
    %496 = vrot.lane.b32.xlu0 %v409, 1
    %v497 = vpop.permute.xlu0 %496
    %498 = vrot.lane.b32.xlu0 %v410, 1
    %v499 = vpop.permute.xlu0 %498
    %500 = vrot.lane.b32.xlu0 %v411, 1
    %v501 = vpop.permute.xlu0 %500
    %502 = vrot.lane.b32.xlu0 %v412, 1
    %v503 = vpop.permute.xlu0 %502
    %504 = vrot.lane.b32.xlu0 %v413, 1
    %v505 = vpop.permute.xlu0 %504
    %506 = vrot.lane.b32.xlu0 %v414, 1
    %v507 = vpop.permute.xlu0 %506
    %508 = vrot.lane.b32.xlu0 %v415, 1
    %v509 = vpop.permute.xlu0 %508
    %510 = vrot.lane.b32.xlu0 %v416, 1
    %v511 = vpop.permute.xlu0 %510
    %512 = vrot.lane.b32.xlu0 %v417, 1
    %v513 = vpop.permute.xlu0 %512
    %v530 = vsub.f32 %v322, %v483
    %v531 = vsub.f32 %v323, %v485
    %v532 = vsub.f32 %v324, %v487
    %v533 = vsub.f32 %v325, %v489
    %v534 = vsub.f32 %v326, %v491
    %v535 = vsub.f32 %v327, %v493
    %v536 = vsub.f32 %v328, %v495
    %v537 = vsub.f32 %v329, %v497
    %v538 = vsub.f32 %v330, %v499
    %v539 = vsub.f32 %v331, %v501
    %v540 = vsub.f32 %v332, %v503
    %v541 = vsub.f32 %v333, %v505
    %v542 = vsub.f32 %v334, %v507
    %v543 = vsub.f32 %v335, %v509
    %v544 = vsub.f32 %v336, %v511
    %v545 = vsub.f32 %v337, %v513
    %v546 = vmul.f32 %v530, 1.442695
    %v547 = vpow.pop %v546
    %v548 = vmul.f32 %v531, 1.442695
    %v549 = vpow.pop %v548
    %v550 = vmul.f32 %v532, 1.442695
    %v551 = vpow.pop %v550
    %v552 = vmul.f32 %v533, 1.442695
    %v553 = vpow.pop %v552
    %v554 = vmul.f32 %v534, 1.442695
    %v555 = vpow.pop %v554
    %v556 = vmul.f32 %v535, 1.442695
    %v557 = vpow.pop %v556
    %v558 = vmul.f32 %v536, 1.442695
    %v559 = vpow.pop %v558
    %v560 = vmul.f32 %v537, 1.442695
    %v561 = vpow.pop %v560
    %v562 = vmul.f32 %v538, 1.442695
    %v563 = vpow.pop %v562
    %v564 = vmul.f32 %v539, 1.442695
    %v565 = vpow.pop %v564
    %v566 = vmul.f32 %v540, 1.442695
    %v567 = vpow.pop %v566
    %v568 = vmul.f32 %v541, 1.442695
    %v569 = vpow.pop %v568
    %v570 = vmul.f32 %v542, 1.442695
    %v571 = vpow.pop %v570
    %v572 = vmul.f32 %v543, 1.442695
    %v573 = vpow.pop %v572
    %v574 = vmul.f32 %v544, 1.442695
    %v575 = vpow.pop %v574
    %v576 = vmul.f32 %v545, 1.442695
    %v577 = vpow.pop %v576
    %v578 = vmul.f32 %v435, %v435
    %v579 = vmul.f32 %v437, %v437
    %v580 = vmul.f32 %v439, %v439
    %v581 = vmul.f32 %v441, %v441
    %v582 = vmul.f32 %v443, %v443
    %v583 = vmul.f32 %v445, %v445
    %v584 = vmul.f32 %v447, %v447
    %v585 = vmul.f32 %v449, %v449
    %v586 = vmul.f32 %v451, %v451
    %v587 = vmul.f32 %v453, %v453
    %v588 = vmul.f32 %v455, %v455
    %v589 = vmul.f32 %v457, %v457
    %v590 = vmul.f32 %v459, %v459
    %v591 = vmul.f32 %v461, %v461
    %v592 = vmul.f32 %v463, %v463
    %v593 = vmul.f32 %v465, %v465
    %v594 = vmul.f32 %v547, %v547
    %v595 = vmul.f32 %v549, %v549
    %v596 = vmul.f32 %v551, %v551
    %v597 = vmul.f32 %v553, %v553
    %v598 = vmul.f32 %v555, %v555
    %v599 = vmul.f32 %v557, %v557
    %v600 = vmul.f32 %v559, %v559
    %v601 = vmul.f32 %v561, %v561
    %v602 = vmul.f32 %v563, %v563
    %v603 = vmul.f32 %v565, %v565
    %v604 = vmul.f32 %v567, %v567
    %v605 = vmul.f32 %v569, %v569
    %v606 = vmul.f32 %v571, %v571
    %v607 = vmul.f32 %v573, %v573
    %v608 = vmul.f32 %v575, %v575
    %v609 = vmul.f32 %v577, %v577
    %626 = vrot.lane.b32.xlu0 %v594, 127
    %v627 = vpop.permute.xlu0 %626
    %628 = vrot.lane.b32.xlu0 %v595, 127
    %v629 = vpop.permute.xlu0 %628
    %630 = vrot.lane.b32.xlu0 %v596, 127
    %v631 = vpop.permute.xlu0 %630
    %632 = vrot.lane.b32.xlu0 %v597, 127
    %v633 = vpop.permute.xlu0 %632
    %634 = vrot.lane.b32.xlu0 %v598, 127
    %v635 = vpop.permute.xlu0 %634
    %636 = vrot.lane.b32.xlu0 %v599, 127
    %v637 = vpop.permute.xlu0 %636
    %638 = vrot.lane.b32.xlu0 %v600, 127
    %v639 = vpop.permute.xlu0 %638
    %640 = vrot.lane.b32.xlu0 %v601, 127
    %v641 = vpop.permute.xlu0 %640
    %642 = vrot.lane.b32.xlu0 %v602, 127
    %v643 = vpop.permute.xlu0 %642
    %644 = vrot.lane.b32.xlu0 %v603, 127
    %v645 = vpop.permute.xlu0 %644
    %646 = vrot.lane.b32.xlu0 %v604, 127
    %v647 = vpop.permute.xlu0 %646
    %648 = vrot.lane.b32.xlu0 %v605, 127
    %v649 = vpop.permute.xlu0 %648
    %650 = vrot.lane.b32.xlu0 %v606, 127
    %v651 = vpop.permute.xlu0 %650
    %652 = vrot.lane.b32.xlu0 %v607, 127
    %v653 = vpop.permute.xlu0 %652
    %654 = vrot.lane.b32.xlu0 %v608, 127
    %v655 = vpop.permute.xlu0 %654
    %656 = vrot.lane.b32.xlu0 %v609, 127
    %v657 = vpop.permute.xlu0 %656
    %v674 = vadd.f32 %v578, %v627
    %v675 = vadd.f32 %v579, %v629
    %v676 = vadd.f32 %v580, %v631
    %v677 = vadd.f32 %v581, %v633
    %v678 = vadd.f32 %v582, %v635
    %v679 = vadd.f32 %v583, %v637
    %v680 = vadd.f32 %v584, %v639
    %v681 = vadd.f32 %v585, %v641
    %v682 = vadd.f32 %v586, %v643
    %v683 = vadd.f32 %v587, %v645
    %v684 = vadd.f32 %v588, %v647
    %v685 = vadd.f32 %v589, %v649
    %v686 = vadd.f32 %v590, %v651
    %v687 = vadd.f32 %v591, %v653
    %v688 = vadd.f32 %v592, %v655
    %v689 = vadd.f32 %v593, %v657
    %v690 = vrsqrt.pop %v674
    %v691 = vrsqrt.pop %v675
    %v692 = vrsqrt.pop %v676
    %v693 = vrsqrt.pop %v677
    %v694 = vrsqrt.pop %v678
    %v695 = vrsqrt.pop %v679
    %v696 = vrsqrt.pop %v680
    %v697 = vrsqrt.pop %v681
    %v698 = vrsqrt.pop %v682
    %v699 = vrsqrt.pop %v683
    %v700 = vrsqrt.pop %v684
    %v701 = vrsqrt.pop %v685
    %v702 = vrsqrt.pop %v686
    %v703 = vrsqrt.pop %v687
    %v704 = vrsqrt.pop %v688
    %v705 = vrsqrt.pop %v689
    %v706 = vmul.f32 %v435, %v690
    %v707 = vmul.f32 %v437, %v691
    %v708 = vmul.f32 %v439, %v692
    %v709 = vmul.f32 %v441, %v693
    %v710 = vmul.f32 %v443, %v694
    %v711 = vmul.f32 %v445, %v695
    %v712 = vmul.f32 %v447, %v696
    %v713 = vmul.f32 %v449, %v697
    %v714 = vmul.f32 %v451, %v698
    %v715 = vmul.f32 %v453, %v699
    %v716 = vmul.f32 %v455, %v700
    %v717 = vmul.f32 %v457, %v701
    %v718 = vmul.f32 %v459, %v702
    %v719 = vmul.f32 %v461, %v703
    %v720 = vmul.f32 %v463, %v704
    %v721 = vmul.f32 %v465, %v705
    %738 = vrot.lane.b32.xlu0 %v690, 1
    %v739 = vpop.permute.xlu0 %738
    %740 = vrot.lane.b32.xlu0 %v691, 1
    %v741 = vpop.permute.xlu0 %740
    %742 = vrot.lane.b32.xlu0 %v692, 1
    %v743 = vpop.permute.xlu0 %742
    %744 = vrot.lane.b32.xlu0 %v693, 1
    %v745 = vpop.permute.xlu0 %744
    %746 = vrot.lane.b32.xlu0 %v694, 1
    %v747 = vpop.permute.xlu0 %746
    %748 = vrot.lane.b32.xlu0 %v695, 1
    %v749 = vpop.permute.xlu0 %748
    %750 = vrot.lane.b32.xlu0 %v696, 1
    %v751 = vpop.permute.xlu0 %750
    %752 = vrot.lane.b32.xlu0 %v697, 1
    %v753 = vpop.permute.xlu0 %752
    %754 = vrot.lane.b32.xlu0 %v698, 1
    %v755 = vpop.permute.xlu0 %754
    %756 = vrot.lane.b32.xlu0 %v699, 1
    %v757 = vpop.permute.xlu0 %756
    %758 = vrot.lane.b32.xlu0 %v700, 1
    %v759 = vpop.permute.xlu0 %758
    %760 = vrot.lane.b32.xlu0 %v701, 1
    %v761 = vpop.permute.xlu0 %760
    %762 = vrot.lane.b32.xlu0 %v702, 1
    %v763 = vpop.permute.xlu0 %762
    %764 = vrot.lane.b32.xlu0 %v703, 1
    %v765 = vpop.permute.xlu0 %764
    %766 = vrot.lane.b32.xlu0 %v704, 1
    %v767 = vpop.permute.xlu0 %766
    %768 = vrot.lane.b32.xlu0 %v705, 1
    %v769 = vpop.permute.xlu0 %768
    %v786 = vmul.f32 %v547, %v739
    %v787 = vmul.f32 %v549, %v741
    %v788 = vmul.f32 %v551, %v743
    %v789 = vmul.f32 %v553, %v745
    %v790 = vmul.f32 %v555, %v747
    %v791 = vmul.f32 %v557, %v749
    %v792 = vmul.f32 %v559, %v751
    %v793 = vmul.f32 %v561, %v753
    %v794 = vmul.f32 %v563, %v755
    %v795 = vmul.f32 %v565, %v757
    %v796 = vmul.f32 %v567, %v759
    %v797 = vmul.f32 %v569, %v761
    %v798 = vmul.f32 %v571, %v763
    %v799 = vmul.f32 %v573, %v765
    %v800 = vmul.f32 %v575, %v767
    %v801 = vmul.f32 %v577, %v769
    %803 = vset.pattern.permute.xlu0 0
    %804 = vperm.xlu0 %803, %v706
    %v805 = vpop.permute.xlu0 %804
    %808 = vset.pattern.permute.xlu0 0
    %809 = vperm.xlu0 %808, %v707
    %v810 = vpop.permute.xlu0 %809
    %813 = vset.pattern.permute.xlu0 0
    %814 = vperm.xlu0 %813, %v708
    %v815 = vpop.permute.xlu0 %814
    %818 = vset.pattern.permute.xlu0 0
    %819 = vperm.xlu0 %818, %v709
    %v820 = vpop.permute.xlu0 %819
    %823 = vset.pattern.permute.xlu0 0
    %824 = vperm.xlu0 %823, %v710
    %v825 = vpop.permute.xlu0 %824
    %828 = vset.pattern.permute.xlu0 0
    %829 = vperm.xlu0 %828, %v711
    %v830 = vpop.permute.xlu0 %829
    %833 = vset.pattern.permute.xlu0 0
    %834 = vperm.xlu0 %833, %v712
    %v835 = vpop.permute.xlu0 %834
    %838 = vset.pattern.permute.xlu0 0
    %839 = vperm.xlu0 %838, %v713
    %v840 = vpop.permute.xlu0 %839
    %843 = vset.pattern.permute.xlu0 0
    %844 = vperm.xlu0 %843, %v714
    %v845 = vpop.permute.xlu0 %844
    %848 = vset.pattern.permute.xlu0 0
    %849 = vperm.xlu0 %848, %v715
    %v850 = vpop.permute.xlu0 %849
    %853 = vset.pattern.permute.xlu0 0
    %854 = vperm.xlu0 %853, %v716
    %v855 = vpop.permute.xlu0 %854
    %858 = vset.pattern.permute.xlu0 0
    %859 = vperm.xlu0 %858, %v717
    %v860 = vpop.permute.xlu0 %859
    %863 = vset.pattern.permute.xlu0 0
    %864 = vperm.xlu0 %863, %v718
    %v865 = vpop.permute.xlu0 %864
    %868 = vset.pattern.permute.xlu0 0
    %869 = vperm.xlu0 %868, %v719
    %v870 = vpop.permute.xlu0 %869
    %873 = vset.pattern.permute.xlu0 0
    %874 = vperm.xlu0 %873, %v720
    %v875 = vpop.permute.xlu0 %874
    %878 = vset.pattern.permute.xlu0 0
    %879 = vperm.xlu0 %878, %v721
    %v880 = vpop.permute.xlu0 %879
    %v882 = vmul.f32 %v805, %v24
    %v883 = vmul.f32 %v810, %v25
    %v884 = vmul.f32 %v815, %v26
    %v885 = vmul.f32 %v820, %v27
    %v886 = vmul.f32 %v825, %v28
    %v887 = vmul.f32 %v830, %v29
    %v888 = vmul.f32 %v835, %v30
    %v889 = vmul.f32 %v840, %v31
    %v890 = vmul.f32 %v845, %v32
    %v891 = vmul.f32 %v850, %v33
    %v892 = vmul.f32 %v855, %v34
    %v893 = vmul.f32 %v860, %v35
    %v894 = vmul.f32 %v865, %v36
    %v895 = vmul.f32 %v870, %v37
    %v896 = vmul.f32 %v875, %v38
    %v897 = vmul.f32 %v880, %v39
    %899 = vset.pattern.permute.xlu0 1
    %900 = vperm.xlu0 %899, %v786
    %v901 = vpop.permute.xlu0 %900
    %904 = vset.pattern.permute.xlu0 1
    %905 = vperm.xlu0 %904, %v787
    %v906 = vpop.permute.xlu0 %905
    %909 = vset.pattern.permute.xlu0 1
    %910 = vperm.xlu0 %909, %v788
    %v911 = vpop.permute.xlu0 %910
    %914 = vset.pattern.permute.xlu0 1
    %915 = vperm.xlu0 %914, %v789
    %v916 = vpop.permute.xlu0 %915
    %919 = vset.pattern.permute.xlu0 1
    %920 = vperm.xlu0 %919, %v790
    %v921 = vpop.permute.xlu0 %920
    %924 = vset.pattern.permute.xlu0 1
    %925 = vperm.xlu0 %924, %v791
    %v926 = vpop.permute.xlu0 %925
    %929 = vset.pattern.permute.xlu0 1
    %930 = vperm.xlu0 %929, %v792
    %v931 = vpop.permute.xlu0 %930
    %934 = vset.pattern.permute.xlu0 1
    %935 = vperm.xlu0 %934, %v793
    %v936 = vpop.permute.xlu0 %935
    %939 = vset.pattern.permute.xlu0 1
    %940 = vperm.xlu0 %939, %v794
    %v941 = vpop.permute.xlu0 %940
    %944 = vset.pattern.permute.xlu0 1
    %945 = vperm.xlu0 %944, %v795
    %v946 = vpop.permute.xlu0 %945
    %949 = vset.pattern.permute.xlu0 1
    %950 = vperm.xlu0 %949, %v796
    %v951 = vpop.permute.xlu0 %950
    %954 = vset.pattern.permute.xlu0 1
    %955 = vperm.xlu0 %954, %v797
    %v956 = vpop.permute.xlu0 %955
    %959 = vset.pattern.permute.xlu0 1
    %960 = vperm.xlu0 %959, %v798
    %v961 = vpop.permute.xlu0 %960
    %964 = vset.pattern.permute.xlu0 1
    %965 = vperm.xlu0 %964, %v799
    %v966 = vpop.permute.xlu0 %965
    %969 = vset.pattern.permute.xlu0 1
    %970 = vperm.xlu0 %969, %v800
    %v971 = vpop.permute.xlu0 %970
    %974 = vset.pattern.permute.xlu0 1
    %975 = vperm.xlu0 %974, %v801
    %v976 = vpop.permute.xlu0 %975
    %v978 = vmul.f32 %v901, %v40
    %v979 = vmul.f32 %v906, %v41
    %v980 = vmul.f32 %v911, %v42
    %v981 = vmul.f32 %v916, %v43
    %v982 = vmul.f32 %v921, %v44
    %v983 = vmul.f32 %v926, %v45
    %v984 = vmul.f32 %v931, %v46
    %v985 = vmul.f32 %v936, %v47
    %v986 = vmul.f32 %v941, %v48
    %v987 = vmul.f32 %v946, %v49
    %v988 = vmul.f32 %v951, %v50
    %v989 = vmul.f32 %v956, %v51
    %v990 = vmul.f32 %v961, %v52
    %v991 = vmul.f32 %v966, %v53
    %v992 = vmul.f32 %v971, %v54
    %v993 = vmul.f32 %v976, %v55
    %v994 = vadd.f32 %v882, %v978
    %v995 = vadd.f32 %v883, %v979
    %v996 = vadd.f32 %v884, %v980
    %v997 = vadd.f32 %v885, %v981
    %v998 = vadd.f32 %v886, %v982
    %v999 = vadd.f32 %v887, %v983
    %v1000 = vadd.f32 %v888, %v984
    %v1001 = vadd.f32 %v889, %v985
    %v1002 = vadd.f32 %v890, %v986
    %v1003 = vadd.f32 %v891, %v987
    %v1004 = vadd.f32 %v892, %v988
    %v1005 = vadd.f32 %v893, %v989
    %v1006 = vadd.f32 %v894, %v990
    %v1007 = vadd.f32 %v895, %v991
    %v1008 = vadd.f32 %v896, %v992
    %v1009 = vadd.f32 %v897, %v993
    %v1010 = vld [vmem:[%s5] sm:$0xff]
    %v1011 = vld [vmem:[%s5 + $0x8] sm:$0xff]
    %v1012 = vld [vmem:[%s5 + $0x10] sm:$0xff]
    %v1013 = vld [vmem:[%s5 + $0x18] sm:$0xff]
    %v1015 = vsel %vm115, %v994, 0
    %v1018 = vsel %vm115, %v995, 0
    %v1021 = vsel %vm115, %v996, 0
    %v1024 = vsel %vm115, %v997, 0
    %v1027 = vsel %vm115, %v998, 0
    %v1030 = vsel %vm115, %v999, 0
    %v1033 = vsel %vm115, %v1000, 0
    %v1036 = vsel %vm115, %v1001, 0
    %v1039 = vsel %vm115, %v1002, 0
    %v1042 = vsel %vm115, %v1003, 0
    %v1045 = vsel %vm115, %v1004, 0
    %v1048 = vsel %vm115, %v1005, 0
    %v1051 = vsel %vm115, %v1006, 0
    %v1054 = vsel %vm115, %v1007, 0
    %v1057 = vsel %vm115, %v1008, 0
    %v1060 = vsel %vm115, %v1009, 0
    %1062 = vmatprep.subr.mxu0 0.0
    %1063 = vmatpush1.msra.mxu0 %v1010
    %1064 = vmatprep.subr.mxu0 0.0
    %1065 = vmatpush1.msra.mxu0 %v1011
    %1066 = vmatprep.subr.mxu0 0.0
    %1067 = vmatpush1.msra.mxu0 %v1012
    %1068 = vmatprep.subr.mxu0 0.0
    %1069 = vmatpush1.msra.mxu0 %v1013
    %1070 = vmatprep.subr.mxu0 0.0
    %1071 = vmatpush1.msra.mxu0 0.0
    %1072 = vmatprep.subr.mxu0 0.0
    %1073 = vmatpush1.msra.mxu0 0.0
    %1074 = vmatprep.subr.mxu0 0.0
    %1075 = vmatpush1.msra.mxu0 0.0
    %1076 = vmatprep.subr.mxu0 0.0
    %1077 = vmatpush1.msra.mxu0 0.0
    %1078 = vmatprep.subr.mxu0 0.0
    %1079 = vmatpush1.msra.mxu0 0.0
    %1080 = vmatprep.subr.mxu0 0.0
    %1081 = vmatpush1.msra.mxu0 0.0
    %1082 = vmatprep.subr.mxu0 0.0
    %1083 = vmatpush1.msra.mxu0 0.0
    %1084 = vmatprep.subr.mxu0 0.0
    %1085 = vmatpush1.msra.mxu0 0.0
    %1086 = vmatprep.subr.mxu0 0.0
    %1087 = vmatpush1.msra.mxu0 0.0
    %1088 = vmatprep.subr.mxu0 0.0
    %1089 = vmatpush1.msra.mxu0 0.0
    %1090 = vmatprep.subr.mxu0 0.0
    %1091 = vmatpush1.msra.mxu0 0.0
    %1092 = vmatprep.subr.mxu0 0.0
    %1093 = vmatpush1.msra.mxu0 0.0
    %1094 = vmatprep.subr.mxu0 0.0
    %1095 = vmatpush1.msra.mxu0 0.0
    %1096 = vmatprep.subr.mxu0 0.0
    %1097 = vmatpush1.msra.mxu0 0.0
    %1098 = vmatprep.subr.mxu0 0.0
    %1099 = vmatpush1.msra.mxu0 0.0
    %1100 = vmatprep.subr.mxu0 0.0
    %1101 = vmatpush1.msra.mxu0 0.0
    %1102 = vmatprep.subr.mxu0 0.0
    %1103 = vmatpush1.msra.mxu0 0.0
    %1104 = vmatprep.subr.mxu0 0.0
    %1105 = vmatpush1.msra.mxu0 0.0
    %1106 = vmatprep.subr.mxu0 0.0
    %1107 = vmatpush1.msra.mxu0 0.0
    %1108 = vmatprep.subr.mxu0 0.0
    %1109 = vmatpush1.msra.mxu0 0.0
    %1110 = vmatprep.subr.mxu0 0.0
    %1111 = vmatpush1.msra.mxu0 0.0
    %1112 = vmatprep.subr.mxu0 0.0
    %1113 = vmatpush1.msra.mxu0 0.0
    %1114 = vmatprep.subr.mxu0 0.0
    %1115 = vmatpush1.msra.mxu0 0.0
    %1116 = vmatprep.subr.mxu0 0.0
    %1117 = vmatpush1.msra.mxu0 0.0
    %1118 = vmatprep.subr.mxu0 0.0
    %1119 = vmatpush1.msra.mxu0 0.0
    %1120 = vmatprep.subr.mxu0 0.0
    %1121 = vmatpush1.msra.mxu0 0.0
    %1122 = vmatprep.subr.mxu0 0.0
    %1123 = vmatpush1.msra.mxu0 0.0
    %1124 = vmatprep.subr.mxu0 0.0
    %1125 = vmatpush1.msra.mxu0 0.0
    %1126 = vmatprep.mubr.f32.mxu0 0.0
    %1127 = vmatmul.mubr.f32.gmra.mrb[0].mxu0 %v1015
    %v1128 = vpop.f32.mrb[0].mxu0
    %v1129 = vadd.f32 0.0, %v1128
    %v1130 = vpop.f32.mrb[0].mxu0
    %1131 = vmatprep.mubr.f32.mxu0 0.0
    %1132 = vmatmul.mubr.f32.gmra.mrb[0].mxu0 %v1018
    %v1133 = vpop.f32.mrb[0].mxu0
    %v1134 = vadd.f32 0.0, %v1133
    %v1135 = vpop.f32.mrb[0].mxu0
    %1136 = vmatprep.mubr.f32.mxu0 0.0
    %1137 = vmatmul.mubr.f32.gmra.mrb[0].mxu0 %v1021
    %v1138 = vpop.f32.mrb[0].mxu0
    %v1139 = vadd.f32 0.0, %v1138
    %v1140 = vpop.f32.mrb[0].mxu0
    %1141 = vmatprep.mubr.f32.mxu0 0.0
    %1142 = vmatmul.mubr.f32.gmra.mrb[0].mxu0 %v1024
    %v1143 = vpop.f32.mrb[0].mxu0
    %v1144 = vadd.f32 0.0, %v1143
    %v1145 = vpop.f32.mrb[0].mxu0
    %1146 = vmatprep.mubr.f32.mxu0 0.0
    %1147 = vmatmul.mubr.f32.gmra.mrb[0].mxu0 %v1027
    %v1148 = vpop.f32.mrb[0].mxu0
    %v1149 = vadd.f32 0.0, %v1148
    %v1150 = vpop.f32.mrb[0].mxu0
    %1151 = vmatprep.mubr.f32.mxu0 0.0
    %1152 = vmatmul.mubr.f32.gmra.mrb[0].mxu0 %v1030
    %v1153 = vpop.f32.mrb[0].mxu0
    %v1154 = vadd.f32 0.0, %v1153
    %v1155 = vpop.f32.mrb[0].mxu0
    %1156 = vmatprep.mubr.f32.mxu0 0.0
    %1157 = vmatmul.mubr.f32.gmra.mrb[0].mxu0 %v1033
    %v1158 = vpop.f32.mrb[0].mxu0
    %v1159 = vadd.f32 0.0, %v1158
    %v1160 = vpop.f32.mrb[0].mxu0
    %1161 = vmatprep.mubr.f32.mxu0 0.0
    %1162 = vmatmul.mubr.f32.gmra.mrb[0].mxu0 %v1036
    %v1163 = vpop.f32.mrb[0].mxu0
    %v1164 = vadd.f32 0.0, %v1163
    %v1165 = vpop.f32.mrb[0].mxu0
    %1166 = vmatprep.mubr.f32.mxu0 0.0
    %1167 = vmatmul.mubr.f32.gmra.mrb[0].mxu0 %v1039
    %v1168 = vpop.f32.mrb[0].mxu0
    %v1169 = vadd.f32 0.0, %v1168
    %v1170 = vpop.f32.mrb[0].mxu0
    %1171 = vmatprep.mubr.f32.mxu0 0.0
    %1172 = vmatmul.mubr.f32.gmra.mrb[0].mxu0 %v1042
    %v1173 = vpop.f32.mrb[0].mxu0
    %v1174 = vadd.f32 0.0, %v1173
    %v1175 = vpop.f32.mrb[0].mxu0
    %1176 = vmatprep.mubr.f32.mxu0 0.0
    %1177 = vmatmul.mubr.f32.gmra.mrb[0].mxu0 %v1045
    %v1178 = vpop.f32.mrb[0].mxu0
    %v1179 = vadd.f32 0.0, %v1178
    %v1180 = vpop.f32.mrb[0].mxu0
    %1181 = vmatprep.mubr.f32.mxu0 0.0
    %1182 = vmatmul.mubr.f32.gmra.mrb[0].mxu0 %v1048
    %v1183 = vpop.f32.mrb[0].mxu0
    %v1184 = vadd.f32 0.0, %v1183
    %v1185 = vpop.f32.mrb[0].mxu0
    %1186 = vmatprep.mubr.f32.mxu0 0.0
    %1187 = vmatmul.mubr.f32.gmra.mrb[0].mxu0 %v1051
    %v1188 = vpop.f32.mrb[0].mxu0
    %v1189 = vadd.f32 0.0, %v1188
    %v1190 = vpop.f32.mrb[0].mxu0
    %1191 = vmatprep.mubr.f32.mxu0 0.0
    %1192 = vmatmul.mubr.f32.gmra.mrb[0].mxu0 %v1054
    %v1193 = vpop.f32.mrb[0].mxu0
    %v1194 = vadd.f32 0.0, %v1193
    %v1195 = vpop.f32.mrb[0].mxu0
    %1196 = vmatprep.mubr.f32.mxu0 0.0
    %1197 = vmatmul.mubr.f32.gmra.mrb[0].mxu0 %v1057
    %v1198 = vpop.f32.mrb[0].mxu0
    %v1199 = vadd.f32 0.0, %v1198
    %v1200 = vpop.f32.mrb[0].mxu0
    %1201 = vmatprep.mubr.f32.mxu0 0.0
    %1202 = vmatmul.mubr.f32.gmra.mrb[0].mxu0 %v1060
    %v1203 = vpop.f32.mrb[0].mxu0
    %v1204 = vadd.f32 0.0, %v1203
    %v1205 = vpop.f32.mrb[0].mxu0
    %1206 = vdwg.mxu0
    %1207 = vst [vmem:[#allocation2] sm:$0xff] %v1129
    %1208 = vst [vmem:[#allocation2 + $0x8] sm:$0xff] %v1134
    %1209 = vst [vmem:[#allocation2 + $0x10] sm:$0xff] %v1139
    %1210 = vst [vmem:[#allocation2 + $0x18] sm:$0xff] %v1144
    %1211 = vst [vmem:[#allocation2 + $0x20] sm:$0xff] %v1149
    %1212 = vst [vmem:[#allocation2 + $0x28] sm:$0xff] %v1154
    %1213 = vst [vmem:[#allocation2 + $0x30] sm:$0xff] %v1159
    %1214 = vst [vmem:[#allocation2 + $0x38] sm:$0xff] %v1164
    %1215 = vst [vmem:[#allocation2 + $0x40] sm:$0xff] %v1169
    %1216 = vst [vmem:[#allocation2 + $0x48] sm:$0xff] %v1174
    %1217 = vst [vmem:[#allocation2 + $0x50] sm:$0xff] %v1179
    %1218 = vst [vmem:[#allocation2 + $0x58] sm:$0xff] %v1184
    %1219 = vst [vmem:[#allocation2 + $0x60] sm:$0xff] %v1189
    %1220 = vst [vmem:[#allocation2 + $0x68] sm:$0xff] %v1194
    %1221 = vst [vmem:[#allocation2 + $0x70] sm:$0xff] %v1199
    %1222 = vst [vmem:[#allocation2 + $0x78] sm:$0xff] %v1204
    // Predicated region
    $region26: #{tpu_custom_call.1} parent=1 // pred_check
      _
    $region27: #{tpu_custom_call.1} parent=1 // pred_check_branch
      %1224 = sbr.rel (0) target = $region29
    $region28: #{tpu_custom_call.1} parent=1 // pred_region
      %s1226 = ssub.s32 2048, 2048
      %1227 = vsyncadd [#allocation3], %s1226
      %s1228 = sshll.u32 [#allocation2], 4
      %s1229 = int_to_ptr.vmem [resolvable:$true] %s1228
      %1234 = dma.vmem_to_hbm [thread:$0]  %s1229, 2048, %s6, [#allocation3], 128, 128, 8
    $region29: #{tpu_custom_call.1} parent=1 // pred_fallthru
      _
    // Predicated region
    $region30: #{tpu_custom_call.1} parent=1 // pred_check
      _
    $region31: #{tpu_custom_call.1} parent=1 // pred_check_branch
      %1236 = sbr.rel (0) target = $region33
    $region32: #{tpu_custom_call.1} parent=1 // pred_region
      %1237 = dma.done [#allocation3], 2048
    $region33: #{tpu_custom_call.1} parent=1 // pred_fallthru
      _
    %1238 = vsyncpa [#allocation3], 1

</llo_original>
